<compile_context>
chip_gen: v7x
topology: tpu7x:2x2x1
jax: 0.10.0
libtpu: 0.0.40
codegen_flags: <defaults>
</compile_context>

<pallas_src>
import jax
import jax.numpy as jnp
from jax.experimental import pallas as pl
from jax.experimental.pallas import tpu as pltpu


def _round_up(x: int, m: int) -> int:
    return (x + m - 1) // m * m


def _embed_classify_kernel(ids_ref, emb_hbm, w_ref, b_ref, out_ref, x_vmem, sem):
    """One grid step handles TN tokens.

    ids_ref : (Npad,)  int32  SMEM (scalar prefetch) -- flat token ids
    emb_hbm : (V, Hp)  f32    HBM  (memory_space=pl.ANY) -- embedding table
    w_ref   : (Hp, Cp) f32    VMEM -- pre-transposed, zero-padded linear weight
    b_ref   : (1, Cp)  f32    VMEM -- zero-padded bias
    out_ref : (TN, Cp) f32    VMEM -- logits tile (lane-dense)
    x_vmem  : (TN, Hp) f32    VMEM scratch -- gathered embedding rows
    sem     : scalar DMA semaphore shared by the TN row copies
    """
    tn, _ = x_vmem.shape
    v = emb_hbm.shape[0]
    base = pl.program_id(0) * tn

    # Issue one row-gather DMA per token in this tile (HBM -> VMEM scratch).
    @pl.loop(0, tn)
    def _issue(t):
        row = jnp.clip(ids_ref[base + t], 0, v - 1)
        pltpu.make_async_copy(
            emb_hbm.at[pl.ds(row, 1), :], x_vmem.at[pl.ds(t, 1), :], sem
        ).start()

    # Wait for all TN equally-sized row copies against the shared semaphore.
    # TODO(synk): for very large TN, double-buffer the gather across grid steps.
    @pl.loop(0, tn)
    def _wait(t):
        pltpu.make_async_copy(
            emb_hbm.at[pl.ds(0, 1), :], x_vmem.at[pl.ds(t, 1), :], sem
        ).wait()

    # Classification head: (TN, Hp) @ (Hp, Cp) + (1, Cp). No transpose needed
    # (weight pre-transposed on host); output block is 128-lane dense.
    logits = jnp.dot(x_vmem[...], w_ref[...], preferred_element_type=jnp.float32)
    out_ref[...] = logits + b_ref[...]


def combined_forward(input_ids, emb_table, lin_w, lin_b, *, tn: int = 256):
    """Pallas equivalent of Combined(Embedding, Linear).forward(input_ids)."""
    b, s = input_ids.shape
    v, h = emb_table.shape
    c = lin_w.shape[0]
    n = b * s

    hp = _round_up(h, 128)            # lane-dense contraction dim
    cp = _round_up(c, 128)            # lane-dense output dim (no vst.msk)
    tn = min(tn, _round_up(n, 8))     # token-tile rows (multiple of 8 sublanes)
    npad = _round_up(n, tn)

    # One-time host-side padding / transpose.  Padding tokens index row 0 and
    # are sliced off after the call; zero-padded H columns do not change the
    # matmul result.
    ids_flat = jnp.zeros((npad,), jnp.int32).at[:n].set(
        input_ids.reshape(n).astype(jnp.int32))
    emb_p = jnp.zeros((v, hp), jnp.float32).at[:, :h].set(
        emb_table.astype(jnp.float32))
    w_t = jnp.zeros((hp, cp), jnp.float32).at[:h, :c].set(
        lin_w.astype(jnp.float32).T)
    b_p = jnp.zeros((1, cp), jnp.float32).at[0, :c].set(
        lin_b.astype(jnp.float32))

    grid = (npad // tn,)

    # VMEM budget: gather scratch + double-buffered output / weight / bias.
    vmem_bytes = 4 * (tn * hp + 2 * tn * cp + 2 * hp * cp + 2 * cp)
    vmem_limit = min(max(2 * vmem_bytes, 4 * 1024 * 1024), 64 * 1024 * 1024)

    cost = pl.CostEstimate(
        flops=2 * npad * hp * cp,
        transcendentals=0,
        bytes_accessed=4 * (npad * hp + npad * cp + hp * cp) + 4 * npad,
    )

    out = pl.pallas_call(
        _embed_classify_kernel,
        out_shape=jax.ShapeDtypeStruct((npad, cp), jnp.float32),
        grid_spec=pltpu.PrefetchScalarGridSpec(
            num_scalar_prefetch=1,                       # ids -> SMEM
            grid=grid,
            in_specs=[
                pl.BlockSpec(memory_space=pl.ANY),       # emb table stays in HBM
                pl.BlockSpec((hp, cp), lambda i, ids: (0, 0)),
                pl.BlockSpec((1, cp), lambda i, ids: (0, 0)),
            ],
            out_specs=pl.BlockSpec((tn, cp), lambda i, ids: (i, 0)),
            scratch_shapes=[
                pltpu.VMEM((tn, hp), jnp.float32),       # gathered rows
                pltpu.SemaphoreType.DMA(()),             # shared DMA semaphore
            ],
        ),
        compiler_params=pltpu.CompilerParams(
            dimension_semantics=("parallel",),           # v7x: 2 TCs split tiles
            vmem_limit_bytes=vmem_limit,
        ),
        cost_estimate=cost,
    )(ids_flat, emb_p, w_t, b_p)

    return out[:n, :c].reshape(b, s, c)


def reference_forward(input_ids, emb_table, lin_w, lin_b):
    x = jnp.take(emb_table, input_ids, axis=0)            # (B, S, H)
    return jnp.einsum("bsh,ch->bsc", x, lin_w) + lin_b    # (B, S, C)


if __name__ == "__main__":
    # Small deterministic setup consistent with embedding -> classification.
    B, S = 2, 8            # batch, sequence length
    VOCAB, HIDDEN = 64, 32
    NUM_CLASSES = 10

    key = jax.random.PRNGKey(0)
    k_ids, k_emb, k_w, k_b = jax.random.split(key, 4)

    input_ids = jax.random.randint(k_ids, (B, S), 0, VOCAB, dtype=jnp.int32)
    emb_table = jax.random.normal(k_emb, (VOCAB, HIDDEN), dtype=jnp.float32) * 0.02
    lin_w = jax.random.normal(k_w, (NUM_CLASSES, HIDDEN), dtype=jnp.float32) * 0.1
    lin_b = jax.random.normal(k_b, (NUM_CLASSES,), dtype=jnp.float32) * 0.1

    out = combined_forward(input_ids, emb_table, lin_w, lin_b)
    out = jax.block_until_ready(out)

    ref = reference_forward(input_ids, emb_table, lin_w, lin_b)
    assert out.shape == (B, S, NUM_CLASSES), out.shape
    assert jnp.allclose(out, ref, atol=1e-5, rtol=1e-5), "mismatch vs reference"

    print("KERNEL_OK")
</pallas_src>

<mosaic_0001>
module attributes {stable_mosaic.version = 11 : i64} {
  func.func @_embed_classify_kernel(%arg0: i32, %arg1: memref<16xi32, #tpu.memory_space<smem>>, %arg2: memref<64x128xf32, #tpu.memory_space<any>>, %arg3: memref<128x128xf32, #tpu.memory_space<vmem>>, %arg4: memref<1x128xf32, #tpu.memory_space<vmem>>, %arg5: memref<16x128xf32, #tpu.memory_space<vmem>>, %arg6: memref<16x128xf32, #tpu.memory_space<vmem>>, %arg7: memref<!tpu.dma_semaphore, #tpu.memory_space<semaphore_mem>>) attributes {dimension_semantics = [#tpu.dimension_semantics<parallel>], iteration_bounds = array<i64: 1>, scalar_prefetch = 1 : i64, scratch_operands = 2 : i64, tpu.core_type = #tpu.core_type<tc>, window_params = [{}, {pipeline_mode = #tpu.pipeline_mode<synchronous>, transform_indices = @transform_1, window_bounds = array<i64: 128, 128>}, {pipeline_mode = #tpu.pipeline_mode<synchronous>, transform_indices = @transform_2, window_bounds = array<i64: 1, 128>}, {transform_indices = @transform_3, window_bounds = array<i64: 16, 128>}]} {
    %c16_i32 = arith.constant 16 : i32
    %0 = arith.muli %arg0, %c16_i32 : i32
    %c0_i32 = arith.constant 0 : i32
    %c16_i32_0 = arith.constant 16 : i32
    %1 = arith.addi %c0_i32, %c16_i32_0 : i32
    %c1_i32 = arith.constant 1 : i32
    scf.for %arg8 = %c0_i32 to %1 step %c1_i32  : i32 {
      %c1_i32_13 = arith.constant 1 : i32
      %10 = arith.muli %arg8, %c1_i32_13 : i32
      %c0_i32_14 = arith.constant 0 : i32
      %11 = arith.addi %c0_i32_14, %10 : i32
      %12 = arith.addi %0, %11 : i32
      %13 = arith.index_cast %12 : i32 to index
      %14 = memref.load %arg1[%13] : memref<16xi32, #tpu.memory_space<smem>>
      %c0_i32_15 = arith.constant 0 : i32
      %c63_i32 = arith.constant 63 : i32
      %15 = arith.maxsi %c0_i32_15, %14 : i32
      %16 = arith.minsi %c63_i32, %15 : i32
      %c0_i32_16 = arith.constant 0 : i32
      %17 = tpu.memref_slice %arg2[%16, %c0_i32_16] : memref<64x128xf32, #tpu.memory_space<any>> -> memref<1x128xf32, #tpu.memory_space<any>>
      %c0_i32_17 = arith.constant 0 : i32
      %18 = tpu.memref_slice %arg6[%11, %c0_i32_17] : memref<16x128xf32, #tpu.memory_space<vmem>> -> memref<1x128xf32, #tpu.memory_space<vmem>>
      tpu.enqueue_dma source(%17 : memref<1x128xf32, #tpu.memory_space<any>>) target(%18 : memref<1x128xf32, #tpu.memory_space<vmem>>) target_semaphore(%arg7 : memref<!tpu.dma_semaphore, #tpu.memory_space<semaphore_mem>>)
    }
    %c16_i32_1 = arith.constant 16 : i32
    %c0_i32_2 = arith.constant 0 : i32
    %c16_i32_3 = arith.constant 16 : i32
    %2 = arith.addi %c0_i32_2, %c16_i32_3 : i32
    %c1_i32_4 = arith.constant 1 : i32
    scf.for %arg8 = %c0_i32_2 to %2 step %c1_i32_4  : i32 {
      %c1_i32_13 = arith.constant 1 : i32
      %10 = arith.muli %arg8, %c1_i32_13 : i32
      %c0_i32_14 = arith.constant 0 : i32
      %11 = arith.addi %c0_i32_14, %10 : i32
      %c0_i32_15 = arith.constant 0 : i32
      %c0_i32_16 = arith.constant 0 : i32
      %12 = tpu.memref_slice %arg2[%c0_i32_15, %c0_i32_16] : memref<64x128xf32, #tpu.memory_space<any>> -> memref<1x128xf32, #tpu.memory_space<any>>
      %c0_i32_17 = arith.constant 0 : i32
      %13 = tpu.memref_slice %arg6[%11, %c0_i32_17] : memref<16x128xf32, #tpu.memory_space<vmem>> -> memref<1x128xf32, #tpu.memory_space<vmem>>
      tpu.wait_dma2 semaphore(%arg7 : memref<!tpu.dma_semaphore, #tpu.memory_space<semaphore_mem>>) src(%12 : memref<1x128xf32, #tpu.memory_space<any>>) dst(%13 : memref<1x128xf32, #tpu.memory_space<vmem>>)
    }
    %c16_i32_5 = arith.constant 16 : i32
    %c0 = arith.constant 0 : index
    %c0_6 = arith.constant 0 : index
    %3 = vector.load %arg6[%c0, %c0_6] : memref<16x128xf32, #tpu.memory_space<vmem>>, vector<16x128xf32>
    %c0_7 = arith.constant 0 : index
    %c0_8 = arith.constant 0 : index
    %4 = vector.load %arg3[%c0_7, %c0_8] : memref<128x128xf32, #tpu.memory_space<vmem>>, vector<128x128xf32>
    %cst = arith.constant dense<0.000000e+00> : vector<16x128xf32>
    %5 = tpu.matmul %3, %4, %cst {dimension_numbers = #tpu.dot_dimension_numbers<[1], [0], [0], [1], [0, 0, 1, 1], [], []>} : vector<16x128xf32>, vector<128x128xf32>, vector<16x128xf32> -> vector<16x128xf32>
    %c0_9 = arith.constant 0 : index
    %c0_10 = arith.constant 0 : index
    %6 = vector.load %arg4[%c0_9, %c0_10] : memref<1x128xf32, #tpu.memory_space<vmem>>, vector<1x128xf32>
    %7 = vector.broadcast %6 : vector<1x128xf32> to vector<16x128xf32>
    %8 = arith.addf %5, %7 : vector<16x128xf32>
    %c0_11 = arith.constant 0 : index
    %c0_12 = arith.constant 0 : index
    %9 = vector.load %arg5[%c0_11, %c0_12] : memref<16x128xf32, #tpu.memory_space<vmem>>, vector<16x128xf32>
    tpu.vector_store %arg5[%c0_11, %c0_12], %8 {strides = array<i32>} : memref<16x128xf32, #tpu.memory_space<vmem>>, vector<16x128xf32>,
    return
  }
  func.func @transform_1(%arg0: i32, %arg1: memref<16xi32, #tpu.memory_space<smem>>) -> (i32, i32) {
    %c0_i32 = arith.constant 0 : i32
    %c0_i32_0 = arith.constant 0 : i32
    %c0_i32_1 = arith.constant 0 : i32
    return %c0_i32, %c0_i32_0 : i32, i32
  }
  func.func @transform_2(%arg0: i32, %arg1: memref<16xi32, #tpu.memory_space<smem>>) -> (i32, i32) {
    %c0_i32 = arith.constant 0 : i32
    %c0_i32_0 = arith.constant 0 : i32
    %c0_i32_1 = arith.constant 0 : i32
    return %c0_i32, %c0_i32_0 : i32, i32
  }
  func.func @transform_3(%arg0: i32, %arg1: memref<16xi32, #tpu.memory_space<smem>>) -> (i32, i32) {
    %c0_i32 = arith.constant 0 : i32
    %c0_i32_0 = arith.constant 0 : i32
    return %arg0, %c0_i32 : i32, i32
  }
}

</mosaic_0001>

<llo_original>
// kernel: tpu_custom_call.1
$region0: #{tpu_custom_call.1}
  #allocation0 [shape = 'u32[]', space=smem, size = 0x4, offset = 0x4, fixed_abs, tag = 'smem constant byte address 0x4 - core index']
  #allocation1 [shape = 'u32[144,128]{1,0:T(1,128)}', space=vmem, size = 0x12000, scoped, tag = 'internal scratch']
  #allocation2 [shape = 'f32[16,128]{1,0:T(8,128)}', space=vmem, size = 0x2000, scoped, tag = 'scratch operand']
  #allocation3 [shape = 's32[1]{0}', space=sflag, size = 0x4, scoped, tag = 'scratch operand']
  #allocation4 [shape = 's32[1]{0}', space=sflag, size = 0x4, scoped, tag = 'scoped memory for tpu_custom_call.1']
  #allocation5 [shape = 'u8[512]{0}', space=smem, size = 0x200, scoped, tag = 'prefetched SMEM operand 0']
  #allocation10 [shape = 's32[]', space=sflag, size = 0x4, offset = 0, fixed_abs, tag = 'sflag constant byte address 0x0 - dummy sync flag']
  #allocation11 [shape = 's32[]', space=sflag, size = 0x4, offset = 0, fixed_abs, tag = 'sflag constant byte address 0x0 - dummy sync flag']
  #allocation12 [shape = 'u32[]', space=smem, size = 0x4, offset = 0x44, fixed_abs, tag = 'smem constant byte address 0x44 - assertion arg 0']
  #allocation13 [shape = 'u32[]', space=smem, size = 0x4, offset = 0x48, fixed_abs, tag = 'smem constant byte address 0x48 - assertion arg 1']
  %s0 = inlined_call_operand.hbm [shape: s32[16], index: 0, kind: input, shape index: {}]
  %s1 = inlined_call_operand.hbm [shape: f32[64,128], index: 1, kind: input, shape index: {}]
  %s2 = inlined_call_operand.hbm [shape: f32[128,128], index: 2, kind: input, shape index: {}]
  %s3 = inlined_call_operand.vmem [shape: f32[1,128], index: 3, kind: input, shape index: {}]
  %s4 = inlined_call_operand.hbm [shape: f32[16,128], index: 4, kind: output, shape index: {}]
  %s5 = sld [smem:[#allocation0]]
  $region40: #{tpu_custom_call.1} parent=0
    _
  %s7 = ssub.s32 1, %s5
  %s8 = scalar_select 0, %s7, %s5
  %10 = dma.hbm_to_smem %s0, 16, [#allocation5], [#allocation4]
  %11 = dma.done [#allocation4], 16
  %12 = sfence
  $region1: #{tpu_custom_call.1} parent=0
    #allocation6 [shape = 'u8[65536]{0}', space=vmem, size = 0x10000, scoped, tag = 'input window, operand 2, single buffered']
    #allocation7 [shape = 's32[1]{0}', space=sflag, size = 0x4, scoped, tag = 'scoped memory for tpu_custom_call.1']
    #allocation8 [shape = 's32[1]{0}', space=sflag, size = 0x4, scoped, tag = 'scoped memory for tpu_custom_call.1']
    #allocation9 [shape = 'u8[8192]{0}', space=vmem, size = 0x2000, scoped, tag = 'output window, operand 0, single buffered']
    %13 = vsyncpa [#allocation7], 0
    %14 = vsyncpa [#allocation8], 0
    // Predicated region
    $region2: #{tpu_custom_call.1} parent=1 // pred_check
      _
    $region3: #{tpu_custom_call.1} parent=1 // pred_check_branch
      %16 = sbr.rel (0) target = $region5
    $region4: #{tpu_custom_call.1} parent=1 // pred_region
      %s18 = ssub.s32 2048, 2048
      %19 = vsyncadd [#allocation7], %s18
      %s20 = sshll.u32 [#allocation6], 4
      %s21 = int_to_ptr.vmem [resolvable:$true] %s20
      %26 = dma.hbm_to_vmem [thread:$0]  %s2, 2048, %s21, [#allocation7], 128, 128, 8
    $region5: #{tpu_custom_call.1} parent=1 // pred_fallthru
      _
    // Predicated region
    $region6: #{tpu_custom_call.1} parent=1 // pred_check
      _
    $region7: #{tpu_custom_call.1} parent=1 // pred_check_branch
      %28 = sbr.rel (0) target = $region9
    $region8: #{tpu_custom_call.1} parent=1 // pred_region
      _
    $region9: #{tpu_custom_call.1} parent=1 // pred_fallthru
      _
    // Predicated region
    $region10: #{tpu_custom_call.1} parent=1 // pred_check
      _
    $region11: #{tpu_custom_call.1} parent=1 // pred_check_branch
      %30 = sbr.rel (0) target = $region13
    $region12: #{tpu_custom_call.1} parent=1 // pred_region
      %31 = dma.done [#allocation7], 2048
    $region13: #{tpu_custom_call.1} parent=1 // pred_fallthru
      _
    %s32 = smul.u32 0, 16
    loop: start=0, step=1, limit=16
    $region14: #{tpu_custom_call.1} parent=1 // loop_pre_header
      _
    $region15: #{tpu_custom_call.1} parent=1 // loop_header
      %s34 = sphi 0, %s38
      %p35 = scmp.ge.s32.totalorder %s34, 16
    $region16: #{tpu_custom_call.1} parent=1 // loop_header_branch
      %37 = sbr.rel (%p35) target = $region20
    $region17: #{tpu_custom_call.1} parent=1 // loop_body
      %s39 = sadd.s32 %s32, %s34
      %s40 = sld [smem:[#allocation5 + %s39]]
      %p41 = scmp.gt.s32.totalorder %s40, 0
      %s42 = scalar_select %p41, %s40, 0
      %p43 = scmp.lt.s32.totalorder %s42, 63
      %s44 = scalar_select %p43, %s42, 63
      %s45 = smul.addr %s44, 16
      %s46 = scalar_lea.hbm %s1, %s45
      %s47 = scalar_lea.vmem [#allocation2], %s34
      // Predicated region
      $region21: #{tpu_custom_call.1} parent=17 // pred_check
        _
      $region22: #{tpu_custom_call.1} parent=17 // pred_check_branch
        %49 = sbr.rel target = $region24
      $region23: #{tpu_custom_call.1} parent=17 // pred_region
        %50 = sst [smem:[#allocation12]] [#allocation11]
        %51 = sst [smem:[#allocation13]] [#allocation10]
      $region24: #{tpu_custom_call.1} parent=17 // pred_fallthru
        _
      %53 = shalt.err (0)
      %s55 = sshll.u32 %s47, 4
      %s56 = int_to_ptr.vmem [resolvable:$true] %s55
      %58 = dma.hbm_to_vmem [thread:$0]  %s46, 16, %s56, [#allocation3]
    $region18: #{tpu_custom_call.1} parent=1 // loop_footer
      %s38 = sadd.s32 1, %s34
    $region19: #{tpu_custom_call.1} parent=1 // loop_footer_branch
      %33 = sbr.rel target = $region15
    $region20: #{tpu_custom_call.1} parent=1 // loop_exit
      _
    loop: start=0, step=1, limit=16
    $region25: #{tpu_custom_call.1} parent=1 // loop_pre_header
      _
    $region26: #{tpu_custom_call.1} parent=1 // loop_header
      %s60 = sphi 0, %s64
      %p61 = scmp.ge.s32.totalorder %s60, 16
    $region27: #{tpu_custom_call.1} parent=1 // loop_header_branch
      %63 = sbr.rel (%p61) target = $region31
    $region28: #{tpu_custom_call.1} parent=1 // loop_body
      %s65 = smul.u32 1, 1
      %s66 = sshll.u32 %s65, 4
      %67 = dma.done [#allocation3], %s66
    $region29: #{tpu_custom_call.1} parent=1 // loop_footer
      %s64 = sadd.s32 1, %s60
    $region30: #{tpu_custom_call.1} parent=1 // loop_footer_branch
      %59 = sbr.rel target = $region26
    $region31: #{tpu_custom_call.1} parent=1 // loop_exit
      _
    %v68 = vld [vmem:[#allocation2] sm:$0xff]
    %v69 = vld [vmem:[#allocation2 + $0x8] sm:$0xff]
    %v70 = vld [vmem:[#allocation6] sm:$0xff]
    %v71 = vld [vmem:[#allocation6 + $0x8] sm:$0xff]
    %v72 = vld [vmem:[#allocation6 + $0x10] sm:$0xff]
    %v73 = vld [vmem:[#allocation6 + $0x18] sm:$0xff]
    %v74 = vld [vmem:[#allocation6 + $0x20] sm:$0xff]
    %v75 = vld [vmem:[#allocation6 + $0x28] sm:$0xff]
    %v76 = vld [vmem:[#allocation6 + $0x30] sm:$0xff]
    %v77 = vld [vmem:[#allocation6 + $0x38] sm:$0xff]
    %v78 = vld [vmem:[#allocation6 + $0x40] sm:$0xff]
    %v79 = vld [vmem:[#allocation6 + $0x48] sm:$0xff]
    %v80 = vld [vmem:[#allocation6 + $0x50] sm:$0xff]
    %v81 = vld [vmem:[#allocation6 + $0x58] sm:$0xff]
    %v82 = vld [vmem:[#allocation6 + $0x60] sm:$0xff]
    %v83 = vld [vmem:[#allocation6 + $0x68] sm:$0xff]
    %v84 = vld [vmem:[#allocation6 + $0x70] sm:$0xff]
    %v85 = vld [vmem:[#allocation6 + $0x78] sm:$0xff]
    %v86 = vld [vmem:[%s3] sm:$0x1]
    %v88 = vlaneseq
    %v89 = vshrl.u32 %v88, 7
    %v90 = vsub.s32 0, %v89
    %v91 = vrot.slane %v86, %v90
    %93 = vmatprep.subr.mxu0 0.0
    %94 = vmatpush1.msra.mxu0 %v70
    %95 = vmatprep.subr.mxu0 0.0
    %96 = vmatpush1.msra.mxu0 %v71
    %97 = vmatprep.subr.mxu0 0.0
    %98 = vmatpush1.msra.mxu0 %v72
    %99 = vmatprep.subr.mxu0 0.0
    %100 = vmatpush1.msra.mxu0 %v73
    %101 = vmatprep.subr.mxu0 0.0
    %102 = vmatpush1.msra.mxu0 %v74
    %103 = vmatprep.subr.mxu0 0.0
    %104 = vmatpush1.msra.mxu0 %v75
    %105 = vmatprep.subr.mxu0 0.0
    %106 = vmatpush1.msra.mxu0 %v76
    %107 = vmatprep.subr.mxu0 0.0
    %108 = vmatpush1.msra.mxu0 %v77
    %109 = vmatprep.subr.mxu0 0.0
    %110 = vmatpush1.msra.mxu0 %v78
    %111 = vmatprep.subr.mxu0 0.0
    %112 = vmatpush1.msra.mxu0 %v79
    %113 = vmatprep.subr.mxu0 0.0
    %114 = vmatpush1.msra.mxu0 %v80
    %115 = vmatprep.subr.mxu0 0.0
    %116 = vmatpush1.msra.mxu0 %v81
    %117 = vmatprep.subr.mxu0 0.0
    %118 = vmatpush1.msra.mxu0 %v82
    %119 = vmatprep.subr.mxu0 0.0
    %120 = vmatpush1.msra.mxu0 %v83
    %121 = vmatprep.subr.mxu0 0.0
    %122 = vmatpush1.msra.mxu0 %v84
    %123 = vmatprep.subr.mxu0 0.0
    %124 = vmatpush1.msra.mxu0 %v85
    %125 = vmatprep.subr.mxu0 0.0
    %126 = vmatpush1.msra.mxu0 0.0
    %127 = vmatprep.subr.mxu0 0.0
    %128 = vmatpush1.msra.mxu0 0.0
    %129 = vmatprep.subr.mxu0 0.0
    %130 = vmatpush1.msra.mxu0 0.0
    %131 = vmatprep.subr.mxu0 0.0
    %132 = vmatpush1.msra.mxu0 0.0
    %133 = vmatprep.subr.mxu0 0.0
    %134 = vmatpush1.msra.mxu0 0.0
    %135 = vmatprep.subr.mxu0 0.0
    %136 = vmatpush1.msra.mxu0 0.0
    %137 = vmatprep.subr.mxu0 0.0
    %138 = vmatpush1.msra.mxu0 0.0
    %139 = vmatprep.subr.mxu0 0.0
    %140 = vmatpush1.msra.mxu0 0.0
    %141 = vmatprep.subr.mxu0 0.0
    %142 = vmatpush1.msra.mxu0 0.0
    %143 = vmatprep.subr.mxu0 0.0
    %144 = vmatpush1.msra.mxu0 0.0
    %145 = vmatprep.subr.mxu0 0.0
    %146 = vmatpush1.msra.mxu0 0.0
    %147 = vmatprep.subr.mxu0 0.0
    %148 = vmatpush1.msra.mxu0 0.0
    %149 = vmatprep.subr.mxu0 0.0
    %150 = vmatpush1.msra.mxu0 0.0
    %151 = vmatprep.subr.mxu0 0.0
    %152 = vmatpush1.msra.mxu0 0.0
    %153 = vmatprep.subr.mxu0 0.0
    %154 = vmatpush1.msra.mxu0 0.0
    %155 = vmatprep.subr.mxu0 0.0
    %156 = vmatpush1.msra.mxu0 0.0
    %157 = vmatprep.mubr.f32.mxu0 0.0
    %158 = vmatmul.mubr.f32.gmra.mrb[0].mxu0 %v68
    %v159 = vpop.f32.mrb[0].mxu0
    %v160 = vadd.f32 %v91, %v159
    %v161 = vpop.f32.mrb[0].mxu0
    %162 = vmatprep.mubr.f32.mxu0 0.0
    %163 = vmatmul.mubr.f32.gmra.mrb[0].mxu0 %v69
    %v164 = vpop.f32.mrb[0].mxu0
    %v165 = vadd.f32 %v91, %v164
    %v166 = vpop.f32.mrb[0].mxu0
    %167 = vdwg.mxu0
    %168 = vst [vmem:[#allocation9] sm:$0xff] %v160
    %169 = vst [vmem:[#allocation9 + $0x8] sm:$0xff] %v165
    // Predicated region
    $region32: #{tpu_custom_call.1} parent=1 // pred_check
      _
    $region33: #{tpu_custom_call.1} parent=1 // pred_check_branch
      %171 = sbr.rel (0) target = $region35
    $region34: #{tpu_custom_call.1} parent=1 // pred_region
      %s173 = ssub.s32 256, 256
      %174 = vsyncadd [#allocation8], %s173
      %s175 = sshll.u32 [#allocation9], 4
      %s176 = int_to_ptr.vmem [resolvable:$true] %s175
      %181 = dma.vmem_to_hbm [thread:$0]  %s176, 256, %s4, [#allocation8], 128, 128, 8
    $region35: #{tpu_custom_call.1} parent=1 // pred_fallthru
      _
    // Predicated region
    $region36: #{tpu_custom_call.1} parent=1 // pred_check
      _
    $region37: #{tpu_custom_call.1} parent=1 // pred_check_branch
      %183 = sbr.rel (0) target = $region39
    $region38: #{tpu_custom_call.1} parent=1 // pred_region
      %184 = dma.done [#allocation8], 256
    $region39: #{tpu_custom_call.1} parent=1 // pred_fallthru
      _
    %185 = vsyncpa [#allocation7], 1
    %186 = vsyncpa [#allocation8], 1
  %187 = vsyncmov [#allocation3]
  %s188 = vpop.sfrf %187
  %p189 = scmp.eq.s32.totalorder %s188, 0
  %p190 = pneg %p189
  %192 = shalt.err (%p190)

</llo_original>
